<compile_context>
chip_gen: v7x
topology: tpu7x:2x2x1
jax: 0.10.0
libtpu: 0.0.40
codegen_flags: <defaults>
</compile_context>

<pallas_src>
import functools

import jax
import jax.numpy as jnp
from jax.experimental import pallas as pl
from jax.experimental.pallas import tpu as pltpu

GN_GROUPS = 16
GN_EPS = 1e-6
LEAKY_SLOPE = 0.2


def _vmem_capacity_bytes():
    """Physical VMEM of the local device; conservative (v7x) fallback if unqueryable."""
    try:
        return int(pltpu.get_tpu_info().vmem_capacity_bytes)
    except Exception:
        return 64 * 1024 * 1024


def _vmem_limit(cap, footprint):
    """Scoped-VMEM limit derived from the actual footprint, capped below physical VMEM."""
    return int(min(0.8 * cap, max(2 * footprint + 2 * 1024 * 1024, 32 * 1024 * 1024)))


@functools.partial(jax.jit, static_argnames=("compute_dtype", "force_two_pass", "tile_nk"))
def shared_mlp_forward(x_nchw, conv_w, conv_b, gn_w, gn_b, *,
                       compute_dtype="bfloat16", force_two_pass=False, tile_nk=None):
    """x_nchw: (B, C_in, N, K) f32 -> (B, C_out, N, K) f32.

    compute_dtype: dtype of the x / w HBM streams ("bfloat16" default; "float32" for exact
                   module numerics).  All accumulation and the epilogue stay in f32.
    """
    B, C_in, N, K = x_nchw.shape
    C_out = conv_w.shape[0]
    assert C_out % GN_GROUPS == 0, "GroupNorm(16, C) requires C % 16 == 0"
    NK = N * K
    cpg = C_out // GN_GROUPS

    cd = jnp.dtype(compute_dtype)
    x_bytes = cd.itemsize

    # Native (B, C, NK) layout: reshape only, no transposes; NK sits on the lane axis so
    # stores are lane-dense even for small C_out.
    x = x_nchw.reshape(B, C_in, NK).astype(cd)
    w = conv_w.reshape(C_out, C_in).astype(cd)
    bias = conv_b.reshape(C_out, 1).astype(jnp.float32)
    gw = gn_w.reshape(C_out, 1).astype(jnp.float32)
    gb = gn_b.reshape(C_out, 1).astype(jnp.float32)

    # same-group indicator: (P @ v)[c] = sum of v over channels in group(c).
    # bf16 holds 0/1 exactly; up-cast in-kernel before the tiny MXU dot.
    grp = jnp.arange(C_out) // cpg
    P = (grp[:, None] == grp[None, :]).astype(jnp.bfloat16)

    nk_f = float(NK)                 # true spatial count
    inv_cnt = 1.0 / float(NK * cpg)  # 1 / elements-per-group

    vmem_cap = _vmem_capacity_bytes()
    nk128 = ((NK + 127) // 128) * 128
    # per-lane-column VMEM bytes: double-buffered x block + double-buffered out block
    # + f32 temporaries (y, y^2, epilogue) the compiler materializes per tile.
    col_bytes = 2 * C_in * x_bytes + 2 * C_out * 4 + 3 * C_out * 4
    param_bytes = (C_out * C_in * x_bytes + C_out * C_out * 2 + 8 * C_out * 4)

    single_pass_ok = (not force_two_pass) and (
        nk128 * col_bytes + param_bytes <= int(0.5 * vmem_cap))

    # ------------------------------------------------------------------ single-pass path
    # Whole (C_out, NK) conv output stays resident: one x read, one matmul, fused epilogue.
    if single_pass_ok:
        def kernel_single(x_ref, w_ref, b_ref, gw_ref, gb_ref, p_ref, o_ref):
            y = jnp.dot(w_ref[...], x_ref[0], preferred_element_type=jnp.float32)
            y = y + b_ref[...]                                   # conv bias (f32)
            s = jnp.sum(y, axis=1, keepdims=True)                # (C_out, 1)
            q = jnp.sum(y * y, axis=1, keepdims=True)
            p = p_ref[...].astype(jnp.float32)
            mean_c = jnp.dot(p, s, preferred_element_type=jnp.float32) * inv_cnt
            e2_c = jnp.dot(p, q, preferred_element_type=jnp.float32) * inv_cnt
            var_c = jnp.maximum(e2_c - mean_c * mean_c, 0.0)     # clamp: no NaN
            scale = jax.lax.rsqrt(var_c + GN_EPS) * gw_ref[...]
            shift = gb_ref[...] - mean_c * scale
            yn = y * scale + shift
            o_ref[0] = jnp.where(yn > 0, yn, LEAKY_SLOPE * yn)

        footprint = nk128 * col_bytes + param_bytes
        cost = pl.CostEstimate(
            flops=2 * B * C_out * C_in * NK,
            transcendentals=B * C_out,
            bytes_accessed=(B * C_in * NK * x_bytes + B * C_out * NK * 4
                            + C_out * C_in * x_bytes + C_out * C_out * 2 + 12 * C_out),
        )
        out = pl.pallas_call(
            kernel_single,
            out_shape=jax.ShapeDtypeStruct((B, C_out, NK), jnp.float32),
            grid_spec=pltpu.PrefetchScalarGridSpec(
                num_scalar_prefetch=0,
                grid=(B,),
                in_specs=[
                    pl.BlockSpec((1, C_in, NK), lambda b: (b, 0, 0)),
                    pl.BlockSpec((C_out, C_in), lambda b: (0, 0)),
                    pl.BlockSpec((C_out, 1), lambda b: (0, 0)),
                    pl.BlockSpec((C_out, 1), lambda b: (0, 0)),
                    pl.BlockSpec((C_out, 1), lambda b: (0, 0)),
                    pl.BlockSpec((C_out, C_out), lambda b: (0, 0)),
                ],
                out_specs=pl.BlockSpec((1, C_out, NK), lambda b: (b, 0, 0)),
            ),
            compiler_params=pltpu.CompilerParams(
                dimension_semantics=("parallel",),
                vmem_limit_bytes=_vmem_limit(vmem_cap, footprint),
            ),
            cost_estimate=cost,
        )(x, w, bias, gw, gb, P)
        return out.reshape(B, C_out, N, K)

    # ------------------------------------------------------------------- two-pass path
    # Phase 0: per-tile matmul + running channel sums / sums-of-squares; finalize fused
    #          (scale, shift) at the last tile.  Phase 1: recompute matmul per tile and
    #          apply one FMA + LeakyReLU (cheaper than spilling y to HBM since C_in<=C_out).
    if tile_nk is not None:
        TNK = max(128, (int(tile_nk) // 128) * 128)
    else:
        tnk_budget = int(0.5 * vmem_cap) // col_bytes
        TNK = max(1024, (min(tnk_budget, 32768) // 512) * 512)
    if TNK >= NK:
        TNK, NT = NK, 1                      # single full-row tile (always layout-legal)
    else:
        NT = -(-NK // TNK)                   # ceil-div; last block may be partial
    needs_mask = (NK % TNK) != 0             # mask tail columns out of the statistics

    def kernel_two(x_ref, w_ref, b_ref, gw_ref, gb_ref, p_ref, o_ref,
                   sum_ref, sq_ref, scale_ref, shift_ref):
        phase = pl.program_id(1)
        t = pl.program_id(2)
        nt = pl.num_programs(2)

        @pl.when(jnp.logical_and(phase == 0, t == 0))
        def _init():
            sum_ref[...] = jnp.zeros_like(sum_ref)
            sq_ref[...] = jnp.zeros_like(sq_ref)

        # 1x1 conv == channel matmul on the MXU (bias folded analytically in finalize).
        y = jnp.dot(w_ref[...], x_ref[0], preferred_element_type=jnp.float32)

        @pl.when(phase == 0)
        def _stats():
            if needs_mask:
                col = jax.lax.broadcasted_iota(jnp.int32, (1, TNK), 1)
                ym = jnp.where(col < (NK - t * TNK), y, 0.0)   # drop padded tail columns
            else:
                ym = y
            sum_ref[...] += jnp.sum(ym, axis=1, keepdims=True)
            sq_ref[...] += jnp.sum(ym * ym, axis=1, keepdims=True)

            @pl.when(t == nt - 1)
            def _finalize():
                bvec = b_ref[...]
                s = sum_ref[...]
                q = sq_ref[...]
                # totals of (Wx + b) and (Wx + b)^2 over the true NK columns
                u = s + nk_f * bvec
                v = q + 2.0 * bvec * s + nk_f * (bvec * bvec)
                p = p_ref[...].astype(jnp.float32)
                mean_c = jnp.dot(p, u, preferred_element_type=jnp.float32) * inv_cnt
                e2_c = jnp.dot(p, v, preferred_element_type=jnp.float32) * inv_cnt
                var_c = jnp.maximum(e2_c - mean_c * mean_c, 0.0)
                scale = jax.lax.rsqrt(var_c + GN_EPS) * gw_ref[...]
                scale_ref[...] = scale
                shift_ref[...] = (bvec - mean_c) * scale + gb_ref[...]

        @pl.when(phase == 1)
        def _write():
            # one fused FMA epilogue + LeakyReLU(0.2); lane-dense store over TNK
            yn = y * scale_ref[...] + shift_ref[...]
            o_ref[0] = jnp.where(yn > 0, yn, LEAKY_SLOPE * yn)

    footprint = TNK * col_bytes + param_bytes
    cost = pl.CostEstimate(
        flops=4 * B * C_out * C_in * NT * TNK,        # matmul run in both phases
        transcendentals=B * C_out,
        bytes_accessed=(2 * B * C_in * NK * x_bytes + B * C_out * NK * 4
                        + 2 * (C_out * C_in * x_bytes + C_out * C_out * 2 + 12 * C_out)),
    )
    out = pl.pallas_call(
        kernel_two,
        out_shape=jax.ShapeDtypeStruct((B, C_out, NK), jnp.float32),
        grid_spec=pltpu.PrefetchScalarGridSpec(
            num_scalar_prefetch=0,
            grid=(B, 2, NT),
            in_specs=[
                pl.BlockSpec((1, C_in, TNK), lambda b, ph, t: (b, 0, t)),
                pl.BlockSpec((C_out, C_in), lambda b, ph, t: (0, 0)),
                pl.BlockSpec((C_out, 1), lambda b, ph, t: (0, 0)),
                pl.BlockSpec((C_out, 1), lambda b, ph, t: (0, 0)),
                pl.BlockSpec((C_out, 1), lambda b, ph, t: (0, 0)),
                pl.BlockSpec((C_out, C_out), lambda b, ph, t: (0, 0)),
            ],
            # phase 0 parks the output on block (b,0,0) (never written there);
            # phase 1 walks and writes every tile exactly once.
            out_specs=pl.BlockSpec((1, C_out, TNK), lambda b, ph, t: (b, 0, t * ph)),
            scratch_shapes=[
                pltpu.VMEM((C_out, 1), jnp.float32),   # running channel sums
                pltpu.VMEM((C_out, 1), jnp.float32),   # running channel sum-of-squares
                pltpu.VMEM((C_out, 1), jnp.float32),   # fused scale
                pltpu.VMEM((C_out, 1), jnp.float32),   # fused shift
            ],
        ),
        compiler_params=pltpu.CompilerParams(
            dimension_semantics=("parallel", "arbitrary", "arbitrary"),
            vmem_limit_bytes=_vmem_limit(vmem_cap, footprint),
        ),
        cost_estimate=cost,
    )(x, w, bias, gw, gb, P)
    return out.reshape(B, C_out, N, K)


def reference_forward(x_nchw, conv_w, conv_b, gn_w, gn_b):
    """Pure-JAX reference mirroring PyTorch: 1x1 conv + GroupNorm(16, eps=1e-6) + LeakyReLU(0.2)."""
    B, C_in, N, K = x_nchw.shape
    C_out = conv_w.shape[0]
    w = conv_w.reshape(C_out, C_in)
    y = jnp.einsum("oc,bcnk->bonk", w, x_nchw) + conv_b.reshape(1, C_out, 1, 1)
    cpg = C_out // GN_GROUPS
    yg = y.reshape(B, GN_GROUPS, cpg, N, K)
    mean = jnp.mean(yg, axis=(2, 3, 4), keepdims=True)
    var = jnp.mean((yg - mean) ** 2, axis=(2, 3, 4), keepdims=True)
    yn = (yg - mean) / jnp.sqrt(var + GN_EPS)
    yn = yn.reshape(B, C_out, N, K)
    yn = yn * gn_w.reshape(1, C_out, 1, 1) + gn_b.reshape(1, C_out, 1, 1)
    return jnp.where(yn > 0, yn, LEAKY_SLOPE * yn)


if __name__ == "__main__":
    key = jax.random.PRNGKey(0)
    k_x, k_w, k_b, k_gw, k_gb, k_x2 = jax.random.split(key, 6)

    # Config 1: small (B, d_in, N, K) consistent with the module -> single-pass kernel.
    B, C_in, C_out, N, K = 2, 8, 32, 16, 8
    x = jax.random.normal(k_x, (B, C_in, N, K), dtype=jnp.float32)
    conv_w = jax.random.normal(k_w, (C_out, C_in, 1, 1), dtype=jnp.float32) * 0.1
    conv_b = jax.random.normal(k_b, (C_out,), dtype=jnp.float32) * 0.1
    gn_w = 1.0 + 0.1 * jax.random.normal(k_gw, (C_out,), dtype=jnp.float32)
    gn_b = 0.1 * jax.random.normal(k_gb, (C_out,), dtype=jnp.float32)
    ref = reference_forward(x, conv_w, conv_b, gn_w, gn_b)

    # Exact f32 path (matches the PyTorch module's numerics).
    out32 = jax.block_until_ready(
        shared_mlp_forward(x, conv_w, conv_b, gn_w, gn_b, compute_dtype="float32"))
    assert out32.shape == (B, C_out, N, K)
    assert jnp.allclose(out32, ref, atol=1e-3, rtol=1e-3), "f32 single-pass mismatch"

    # Default perf path: bf16 HBM streams, f32 accumulation + f32 epilogue.
    out16 = jax.block_until_ready(shared_mlp_forward(x, conv_w, conv_b, gn_w, gn_b))
    assert jnp.allclose(out16, ref, atol=5e-2, rtol=5e-2), "bf16 single-pass mismatch"

    # Config 2: ragged NK (20*16 = 320, not a multiple of 128) forced through the two-pass
    # streaming kernel with a small tile -> exercises partial edge blocks and the in-kernel
    # tail masking (no wrapper-side pad / slice copies).
    B2, N2, K2 = 1, 20, 16
    x2 = jax.random.normal(k_x2, (B2, C_in, N2, K2), dtype=jnp.float32)
    ref2 = reference_forward(x2, conv_w, conv_b, gn_w, gn_b)
    out2 = jax.block_until_ready(
        shared_mlp_forward(x2, conv_w, conv_b, gn_w, gn_b,
                           compute_dtype="float32", force_two_pass=True, tile_nk=128))
    assert out2.shape == (B2, C_out, N2, K2)
    assert jnp.allclose(out2, ref2, atol=1e-3, rtol=1e-3), "f32 two-pass mismatch"

    print("KERNEL_OK")
</pallas_src>

<mosaic_0001>
module attributes {stable_mosaic.version = 11 : i64} {
  func.func @kernel_single(%arg0: i32, %arg1: memref<1x8x128xf32, #tpu.memory_space<vmem>>, %arg2: memref<32x8xf32, #tpu.memory_space<vmem>>, %arg3: memref<32x1xf32, #tpu.memory_space<vmem>>, %arg4: memref<32x1xf32, #tpu.memory_space<vmem>>, %arg5: memref<32x1xf32, #tpu.memory_space<vmem>>, %arg6: memref<32x32xbf16, #tpu.memory_space<vmem>>, %arg7: memref<1x32x128xf32, #tpu.memory_space<vmem>>) attributes {dimension_semantics = [#tpu.dimension_semantics<parallel>], iteration_bounds = array<i64: 2>, scalar_prefetch = 0 : i64, scratch_operands = 0 : i64, tpu.core_type = #tpu.core_type<tc>, window_params = [{transform_indices = @transform_0, window_bounds = array<i64: 1, 8, 128>}, {pipeline_mode = #tpu.pipeline_mode<synchronous>, transform_indices = @transform_1, window_bounds = array<i64: 32, 8>}, {pipeline_mode = #tpu.pipeline_mode<synchronous>, transform_indices = @transform_2, window_bounds = array<i64: 32, 1>}, {pipeline_mode = #tpu.pipeline_mode<synchronous>, transform_indices = @transform_3, window_bounds = array<i64: 32, 1>}, {pipeline_mode = #tpu.pipeline_mode<synchronous>, transform_indices = @transform_4, window_bounds = array<i64: 32, 1>}, {pipeline_mode = #tpu.pipeline_mode<synchronous>, transform_indices = @transform_5, window_bounds = array<i64: 32, 32>}, {transform_indices = @transform_6, window_bounds = array<i64: 1, 32, 128>}]} {
    %c0 = arith.constant 0 : index
    %c0_0 = arith.constant 0 : index
    %0 = vector.load %arg2[%c0, %c0_0] : memref<32x8xf32, #tpu.memory_space<vmem>>, vector<32x8xf32>
    %c0_1 = arith.constant 0 : index
    %c0_2 = arith.constant 0 : index
    %c0_3 = arith.constant 0 : index
    %1 = vector.load %arg1[%c0_1, %c0_2, %c0_3] : memref<1x8x128xf32, #tpu.memory_space<vmem>>, vector<1x8x128xf32>
    %2 = vector.shape_cast %1 : vector<1x8x128xf32> to vector<8x128xf32>
    %cst = arith.constant dense<0.000000e+00> : vector<32x128xf32>
    %3 = tpu.matmul %0, %2, %cst {dimension_numbers = #tpu.dot_dimension_numbers<[1], [0], [0], [1], [0, 0, 1, 1], [], []>} : vector<32x8xf32>, vector<8x128xf32>, vector<32x128xf32> -> vector<32x128xf32>
    %c0_4 = arith.constant 0 : index
    %c0_5 = arith.constant 0 : index
    %4 = vector.load %arg3[%c0_4, %c0_5] : memref<32x1xf32, #tpu.memory_space<vmem>>, vector<32x1xf32>
    %5 = vector.broadcast %4 : vector<32x1xf32> to vector<32x128xf32>
    %6 = arith.addf %3, %5 : vector<32x128xf32>
    %cst_6 = arith.constant dense<0.000000e+00> : vector<32xf32>
    %7 = vector.multi_reduction <add>, %6, %cst_6 [1] : vector<32x128xf32> to vector<32xf32>
    %8 = vector.shape_cast %7 : vector<32xf32> to vector<32x1xf32>
    %9 = arith.mulf %6, %6 : vector<32x128xf32>
    %cst_7 = arith.constant dense<0.000000e+00> : vector<32xf32>
    %10 = vector.multi_reduction <add>, %9, %cst_7 [1] : vector<32x128xf32> to vector<32xf32>
    %11 = vector.shape_cast %10 : vector<32xf32> to vector<32x1xf32>
    %c0_8 = arith.constant 0 : index
    %c0_9 = arith.constant 0 : index
    %12 = vector.load %arg6[%c0_8, %c0_9] : memref<32x32xbf16, #tpu.memory_space<vmem>>, vector<32x32xbf16>
    %13 = arith.extf %12 : vector<32x32xbf16> to vector<32x32xf32>
    %cst_10 = arith.constant dense<0.000000e+00> : vector<32x1xf32>
    %14 = tpu.matmul %13, %8, %cst_10 {dimension_numbers = #tpu.dot_dimension_numbers<[1], [0], [0], [1], [0, 0, 1, 1], [], []>} : vector<32x32xf32>, vector<32x1xf32>, vector<32x1xf32> -> vector<32x1xf32>
    %cst_11 = arith.constant 3.906250e-03 : f32
    %15 = vector.broadcast %cst_11 : f32 to vector<32x1xf32>
    %16 = arith.mulf %14, %15 : vector<32x1xf32>
    %cst_12 = arith.constant dense<0.000000e+00> : vector<32x1xf32>
    %17 = tpu.matmul %13, %11, %cst_12 {dimension_numbers = #tpu.dot_dimension_numbers<[1], [0], [0], [1], [0, 0, 1, 1], [], []>} : vector<32x32xf32>, vector<32x1xf32>, vector<32x1xf32> -> vector<32x1xf32>
    %cst_13 = arith.constant 3.906250e-03 : f32
    %18 = vector.broadcast %cst_13 : f32 to vector<32x1xf32>
    %19 = arith.mulf %17, %18 : vector<32x1xf32>
    %20 = arith.mulf %16, %16 : vector<32x1xf32>
    %21 = arith.subf %19, %20 : vector<32x1xf32>
    %cst_14 = arith.constant 0.000000e+00 : f32
    %22 = vector.broadcast %cst_14 : f32 to vector<32x1xf32>
    %23 = arith.maximumf %21, %22 : vector<32x1xf32>
    %cst_15 = arith.constant 9.99999997E-7 : f32
    %24 = vector.broadcast %cst_15 : f32 to vector<32x1xf32>
    %25 = arith.addf %23, %24 : vector<32x1xf32>
    %26 = math.rsqrt %25 : vector<32x1xf32>
    %c0_16 = arith.constant 0 : index
    %c0_17 = arith.constant 0 : index
    %27 = vector.load %arg4[%c0_16, %c0_17] : memref<32x1xf32, #tpu.memory_space<vmem>>, vector<32x1xf32>
    %28 = arith.mulf %26, %27 : vector<32x1xf32>
    %c0_18 = arith.constant 0 : index
    %c0_19 = arith.constant 0 : index
    %29 = vector.load %arg5[%c0_18, %c0_19] : memref<32x1xf32, #tpu.memory_space<vmem>>, vector<32x1xf32>
    %30 = arith.mulf %16, %28 : vector<32x1xf32>
    %31 = arith.subf %29, %30 : vector<32x1xf32>
    %32 = vector.broadcast %28 : vector<32x1xf32> to vector<32x128xf32>
    %33 = arith.mulf %6, %32 : vector<32x128xf32>
    %34 = vector.broadcast %31 : vector<32x1xf32> to vector<32x128xf32>
    %35 = arith.addf %33, %34 : vector<32x128xf32>
    %cst_20 = arith.constant 0.000000e+00 : f32
    %36 = vector.broadcast %cst_20 : f32 to vector<32x128xf32>
    %37 = arith.cmpf ogt, %35, %36 : vector<32x128xf32>
    %cst_21 = arith.constant 2.000000e-01 : f32
    %38 = vector.broadcast %cst_21 : f32 to vector<32x128xf32>
    %39 = arith.mulf %38, %35 : vector<32x128xf32>
    %40 = arith.select %37, %35, %39 : vector<32x128xi1>, vector<32x128xf32>
    %c0_22 = arith.constant 0 : index
    %c0_23 = arith.constant 0 : index
    %c0_24 = arith.constant 0 : index
    %41 = vector.load %arg7[%c0_22, %c0_23, %c0_24] : memref<1x32x128xf32, #tpu.memory_space<vmem>>, vector<1x32x128xf32>
    %42 = vector.shape_cast %41 : vector<1x32x128xf32> to vector<32x128xf32>
    %43 = vector.shape_cast %40 : vector<32x128xf32> to vector<1x32x128xf32>
    tpu.vector_store %arg7[%c0_22, %c0_23, %c0_24], %43 {strides = array<i32>} : memref<1x32x128xf32, #tpu.memory_space<vmem>>, vector<1x32x128xf32>,
    return
  }
  func.func @transform_0(%arg0: i32) -> (i32, i32, i32) {
    %c0_i32 = arith.constant 0 : i32
    %c0_i32_0 = arith.constant 0 : i32
    %c0_i32_1 = arith.constant 0 : i32
    return %arg0, %c0_i32, %c0_i32_0 : i32, i32, i32
  }
  func.func @transform_1(%arg0: i32) -> (i32, i32) {
    %c0_i32 = arith.constant 0 : i32
    %c0_i32_0 = arith.constant 0 : i32
    %c0_i32_1 = arith.constant 0 : i32
    return %c0_i32, %c0_i32_0 : i32, i32
  }
  func.func @transform_2(%arg0: i32) -> (i32, i32) {
    %c0_i32 = arith.constant 0 : i32
    %c0_i32_0 = arith.constant 0 : i32
    %c0_i32_1 = arith.constant 0 : i32
    return %c0_i32, %c0_i32_0 : i32, i32
  }
  func.func @transform_3(%arg0: i32) -> (i32, i32) {
    %c0_i32 = arith.constant 0 : i32
    %c0_i32_0 = arith.constant 0 : i32
    %c0_i32_1 = arith.constant 0 : i32
    return %c0_i32, %c0_i32_0 : i32, i32
  }
  func.func @transform_4(%arg0: i32) -> (i32, i32) {
    %c0_i32 = arith.constant 0 : i32
    %c0_i32_0 = arith.constant 0 : i32
    %c0_i32_1 = arith.constant 0 : i32
    return %c0_i32, %c0_i32_0 : i32, i32
  }
  func.func @transform_5(%arg0: i32) -> (i32, i32) {
    %c0_i32 = arith.constant 0 : i32
    %c0_i32_0 = arith.constant 0 : i32
    %c0_i32_1 = arith.constant 0 : i32
    return %c0_i32, %c0_i32_0 : i32, i32
  }
  func.func @transform_6(%arg0: i32) -> (i32, i32, i32) {
    %c0_i32 = arith.constant 0 : i32
    %c0_i32_0 = arith.constant 0 : i32
    %c0_i32_1 = arith.constant 0 : i32
    return %arg0, %c0_i32, %c0_i32_0 : i32, i32, i32
  }
}

</mosaic_0001>

<llo_original>
// kernel: shared_mlp_forward.1
$region0: #{shared_mlp_forward.1}
  #allocation0 [shape = 'u32[]', space=smem, size = 0x4, offset = 0x4, fixed_abs, tag = 'smem constant byte address 0x4 - core index']
  #allocation1 [shape = 'u32[144,128]{1,0:T(1,128)}', space=vmem, size = 0x12000, scoped, tag = 'internal scratch']
  %s0 = inlined_call_operand.vmem [shape: f32[2,8,128], index: 0, kind: input, shape index: {}]
  %s1 = inlined_call_operand.vmem [shape: f32[32,8], index: 1, kind: input, shape index: {}]
  %s2 = inlined_call_operand.vmem [shape: f32[32,1], index: 2, kind: input, shape index: {}]
  %s3 = inlined_call_operand.vmem [shape: f32[32,1], index: 3, kind: input, shape index: {}]
  %s4 = inlined_call_operand.vmem [shape: f32[32,1], index: 4, kind: input, shape index: {}]
  %s5 = inlined_call_operand.vmem [shape: bf16[32,32], index: 5, kind: input, shape index: {}]
  %s6 = inlined_call_operand.vmem [shape: f32[2,32,128], index: 6, kind: output, shape index: {}]
  %s7 = sld [smem:[#allocation0]]
  $region57: #{shared_mlp_forward.1} parent=0
    _
  %s9 = ssub.s32 1, %s7
  %s10 = scalar_select 0, %s9, %s7
  loop: start=0, step=1, limit=4
  $region2: #{shared_mlp_forward.1} parent=0 // loop_pre_header
    _
  $region3: #{shared_mlp_forward.1} parent=0 // loop_header
    %s12 = sphi 0, %s16
    %p13 = scmp.ge.s32.totalorder %s12, 4
    %s22 = sphi 0, %s24
    %s25 = sphi 0, %s22
    %s26 = sphi 0, %s25
    %s42 = sphi 0, %s26
    %s46 = sphi 0, %s46
    %s48 = sphi 0, %s46
    %s49 = sphi 0, %s48
    %s63 = sphi 0, %s49
    %s67 = sphi 0, %s67
    %s69 = sphi 0, %s67
    %s70 = sphi 0, %s69
    %s84 = sphi 0, %s70
    %s88 = sphi 0, %s88
    %s90 = sphi 0, %s88
    %s91 = sphi 0, %s90
    %s105 = sphi 0, %s91
    %s109 = sphi 0, %s109
    %s111 = sphi 0, %s109
    %s112 = sphi 0, %s111
    %s126 = sphi 0, %s112
    %s130 = sphi 0, %s130
    %s132 = sphi 0, %s130
    %s133 = sphi 0, %s132
    %s147 = sphi 0, %s133
    %s153 = sphi 0, %s155
    %s156 = sphi 0, %s153
    %s157 = sphi 0, %s156
    %s173 = sphi 0, %s157
  $region4: #{shared_mlp_forward.1} parent=0 // loop_header_branch
    %15 = sbr.rel (%p13) target = $region8
  $region5: #{shared_mlp_forward.1} parent=0 // loop_body
    %s17 = ssub.s32 %s12, 1
    %s18 = ssub.s32 %s12, 2
    %s19 = sadd.s32 %s12, 1
    %s20 = ssub.s32 %s12, %s19
    %p21 = scmp.eq.s32.totalorder %s20, 0
    %s23 = sadd.s32 %s22, 1
    %s24 = scalar_select %p21, %s22, %s23
    %p27 = pneg %p21
    %p28 = scmp.eq.s32.totalorder %s12, 1
    %p29 = por %p27, %p28
    %p30 = scmp.ne.s32.totalorder %s22, %s25
    %p31 = scmp.eq.s32.totalorder %s12, 0
    %p32 = por %p30, %p31
    %p33 = scmp.ne.s32.totalorder %s22, %s25
    %p34 = scmp.eq.s32.totalorder %s17, 1
    %p35 = por %p33, %p34
    %p36 = scmp.ne.s32.totalorder %s25, %s26
    %p37 = scmp.eq.s32.totalorder %s17, 0
    %p38 = por %p36, %p37
    %p39 = scmp.ne.s32.totalorder %s25, %s26
    %p40 = scmp.eq.s32.totalorder %s18, 1
    %p41 = por %p39, %p40
    %p43 = scmp.ne.s32.totalorder %s26, %s42
    %p44 = scmp.eq.s32.totalorder %s18, 0
    %p45 = por %p43, %p44
    %s47 = sadd.s32 %s46, 1
    %p50 = scmp.eq.s32.totalorder %s12, 1
    %p51 = scmp.ne.s32.totalorder %s46, %s48
    %p52 = scmp.eq.s32.totalorder %s12, 0
    %p53 = por %p51, %p52
    %p54 = scmp.ne.s32.totalorder %s46, %s48
    %p55 = scmp.eq.s32.totalorder %s17, 1
    %p56 = por %p54, %p55
    %p57 = scmp.ne.s32.totalorder %s48, %s49
    %p58 = scmp.eq.s32.totalorder %s17, 0
    %p59 = por %p57, %p58
    %p60 = scmp.ne.s32.totalorder %s48, %s49
    %p61 = scmp.eq.s32.totalorder %s18, 1
    %p62 = por %p60, %p61
    %p64 = scmp.ne.s32.totalorder %s49, %s63
    %p65 = scmp.eq.s32.totalorder %s18, 0
    %p66 = por %p64, %p65
    %s68 = sadd.s32 %s67, 1
    %p71 = scmp.eq.s32.totalorder %s12, 1
    %p72 = scmp.ne.s32.totalorder %s67, %s69
    %p73 = scmp.eq.s32.totalorder %s12, 0
    %p74 = por %p72, %p73
    %p75 = scmp.ne.s32.totalorder %s67, %s69
    %p76 = scmp.eq.s32.totalorder %s17, 1
    %p77 = por %p75, %p76
    %p78 = scmp.ne.s32.totalorder %s69, %s70
    %p79 = scmp.eq.s32.totalorder %s17, 0
    %p80 = por %p78, %p79
    %p81 = scmp.ne.s32.totalorder %s69, %s70
    %p82 = scmp.eq.s32.totalorder %s18, 1
    %p83 = por %p81, %p82
    %p85 = scmp.ne.s32.totalorder %s70, %s84
    %p86 = scmp.eq.s32.totalorder %s18, 0
    %p87 = por %p85, %p86
    %s89 = sadd.s32 %s88, 1
    %p92 = scmp.eq.s32.totalorder %s12, 1
    %p93 = scmp.ne.s32.totalorder %s88, %s90
    %p94 = scmp.eq.s32.totalorder %s12, 0
    %p95 = por %p93, %p94
    %p96 = scmp.ne.s32.totalorder %s88, %s90
    %p97 = scmp.eq.s32.totalorder %s17, 1
    %p98 = por %p96, %p97
    %p99 = scmp.ne.s32.totalorder %s90, %s91
    %p100 = scmp.eq.s32.totalorder %s17, 0
    %p101 = por %p99, %p100
    %p102 = scmp.ne.s32.totalorder %s90, %s91
    %p103 = scmp.eq.s32.totalorder %s18, 1
    %p104 = por %p102, %p103
    %p106 = scmp.ne.s32.totalorder %s91, %s105
    %p107 = scmp.eq.s32.totalorder %s18, 0
    %p108 = por %p106, %p107
    %s110 = sadd.s32 %s109, 1
    %p113 = scmp.eq.s32.totalorder %s12, 1
    %p114 = scmp.ne.s32.totalorder %s109, %s111
    %p115 = scmp.eq.s32.totalorder %s12, 0
    %p116 = por %p114, %p115
    %p117 = scmp.ne.s32.totalorder %s109, %s111
    %p118 = scmp.eq.s32.totalorder %s17, 1
    %p119 = por %p117, %p118
    %p120 = scmp.ne.s32.totalorder %s111, %s112
    %p121 = scmp.eq.s32.totalorder %s17, 0
    %p122 = por %p120, %p121
    %p123 = scmp.ne.s32.totalorder %s111, %s112
    %p124 = scmp.eq.s32.totalorder %s18, 1
    %p125 = por %p123, %p124
    %p127 = scmp.ne.s32.totalorder %s112, %s126
    %p128 = scmp.eq.s32.totalorder %s18, 0
    %p129 = por %p127, %p128
    %s131 = sadd.s32 %s130, 1
    %p134 = scmp.eq.s32.totalorder %s12, 1
    %p135 = scmp.ne.s32.totalorder %s130, %s132
    %p136 = scmp.eq.s32.totalorder %s12, 0
    %p137 = por %p135, %p136
    %p138 = scmp.ne.s32.totalorder %s130, %s132
    %p139 = scmp.eq.s32.totalorder %s17, 1
    %p140 = por %p138, %p139
    %p141 = scmp.ne.s32.totalorder %s132, %s133
    %p142 = scmp.eq.s32.totalorder %s17, 0
    %p143 = por %p141, %p142
    %p144 = scmp.ne.s32.totalorder %s132, %s133
    %p145 = scmp.eq.s32.totalorder %s18, 1
    %p146 = por %p144, %p145
    %p148 = scmp.ne.s32.totalorder %s133, %s147
    %p149 = scmp.eq.s32.totalorder %s18, 0
    %p150 = por %p148, %p149
    %s151 = ssub.s32 %s12, %s19
    %p152 = scmp.eq.s32.totalorder %s151, 0
    %s154 = sadd.s32 %s153, 1
    %s155 = scalar_select %p152, %s153, %s154
    %p158 = pneg %p152
    %p159 = scmp.eq.s32.totalorder %s12, 1
    %p160 = por %p158, %p159
    %p161 = scmp.ne.s32.totalorder %s153, %s156
    %p162 = scmp.eq.s32.totalorder %s12, 0
    %p163 = por %p161, %p162
    %p164 = scmp.ne.s32.totalorder %s153, %s156
    %p165 = scmp.eq.s32.totalorder %s17, 1
    %p166 = por %p164, %p165
    %p167 = scmp.ne.s32.totalorder %s156, %s157
    %p168 = scmp.eq.s32.totalorder %s17, 0
    %p169 = por %p167, %p168
    %p170 = scmp.ne.s32.totalorder %s156, %s157
    %p171 = scmp.eq.s32.totalorder %s18, 1
    %p172 = por %p170, %p171
    %p174 = scmp.ne.s32.totalorder %s157, %s173
    %p175 = scmp.eq.s32.totalorder %s18, 0
    %p176 = por %p174, %p175
    %p177 = scmp.le.s32.totalorder 1, %s12
    %p178 = scmp.lt.s32.totalorder %s12, 3
    %p179 = pnand %p177, %p178
    %p180 = pneg %p179
    // Predicated region
    $region9: #{shared_mlp_forward.1} parent=5 // pred_check
      _
    $region10: #{shared_mlp_forward.1} parent=5 // pred_check_branch
      %182 = sbr.rel (%p179) target = $region12
    $region11: #{shared_mlp_forward.1} parent=5 // pred_region
      %s183 = ssub.s32 %s12, 1
      // Predicated region
      $region13: #{shared_mlp_forward.1} parent=11 // pred_check
        %p184 = pneg %p59
      $region14: #{shared_mlp_forward.1} parent=11 // pred_check_branch
        %186 = sbr.rel (%p184) target = $region16
      $region15: #{shared_mlp_forward.1} parent=11 // pred_region
        _
      $region16: #{shared_mlp_forward.1} parent=11 // pred_fallthru
        _
      // Predicated region
      $region17: #{shared_mlp_forward.1} parent=11 // pred_check
        %p187 = pneg %p80
      $region18: #{shared_mlp_forward.1} parent=11 // pred_check_branch
        %189 = sbr.rel (%p187) target = $region20
      $region19: #{shared_mlp_forward.1} parent=11 // pred_region
        _
      $region20: #{shared_mlp_forward.1} parent=11 // pred_fallthru
        _
      // Predicated region
      $region21: #{shared_mlp_forward.1} parent=11 // pred_check
        %p190 = pneg %p101
      $region22: #{shared_mlp_forward.1} parent=11 // pred_check_branch
        %192 = sbr.rel (%p190) target = $region24
      $region23: #{shared_mlp_forward.1} parent=11 // pred_region
        _
      $region24: #{shared_mlp_forward.1} parent=11 // pred_fallthru
        _
      // Predicated region
      $region25: #{shared_mlp_forward.1} parent=11 // pred_check
        %p193 = pneg %p122
      $region26: #{shared_mlp_forward.1} parent=11 // pred_check_branch
        %195 = sbr.rel (%p193) target = $region28
      $region27: #{shared_mlp_forward.1} parent=11 // pred_region
        _
      $region28: #{shared_mlp_forward.1} parent=11 // pred_fallthru
        _
      // Predicated region
      $region29: #{shared_mlp_forward.1} parent=11 // pred_check
        %p196 = pneg %p143
      $region30: #{shared_mlp_forward.1} parent=11 // pred_check_branch
        %198 = sbr.rel (%p196) target = $region32
      $region31: #{shared_mlp_forward.1} parent=11 // pred_region
        _
      $region32: #{shared_mlp_forward.1} parent=11 // pred_fallthru
        _
    $region12: #{shared_mlp_forward.1} parent=5 // pred_fallthru
      _
    %p199 = scmp.lt.s32.totalorder %s12, 2
    // Predicated region
    $region33: #{shared_mlp_forward.1} parent=5 // pred_check
      %p200 = pneg %p199
    $region34: #{shared_mlp_forward.1} parent=5 // pred_check_branch
      %202 = sbr.rel (%p200) target = $region36
    $region35: #{shared_mlp_forward.1} parent=5 // pred_region
      // Predicated region
      $region37: #{shared_mlp_forward.1} parent=35 // pred_check
        %p203 = pneg %p32
      $region38: #{shared_mlp_forward.1} parent=35 // pred_check_branch
        %205 = sbr.rel (%p203) target = $region40
      $region39: #{shared_mlp_forward.1} parent=35 // pred_region
        %p206 = scmp.lt.s32.totalorder %s12, 1
        %s207 = scalar_select %p206, %s12, 1
        %s208 = smul.addr %s207, 8
        %s209 = scalar_lea.vmem %s0, %s208
      $region40: #{shared_mlp_forward.1} parent=35 // pred_fallthru
        _
    $region36: #{shared_mlp_forward.1} parent=5 // pred_fallthru
      _
    %p210 = scmp.le.s32.totalorder 1, %s12
    %p211 = scmp.lt.s32.totalorder %s12, 3
    %p212 = pnand %p210, %p211
    %p213 = pneg %p212
    // Predicated region
    $region41: #{shared_mlp_forward.1} parent=5 // pred_check
      _
    $region42: #{shared_mlp_forward.1} parent=5 // pred_check_branch
      %215 = sbr.rel (%p212) target = $region44
    $region43: #{shared_mlp_forward.1} parent=5 // pred_region
      %s216 = ssub.s32 %s12, 1
      %p217 = scmp.lt.s32.totalorder %s17, 1
      %s218 = scalar_select %p217, %s17, 1
      %s219 = smul.addr %s218, 8
      %s220 = scalar_lea.vmem %s0, %s219
      %p221 = pneg %p38
      %p222 = pneg %p35
      %p223 = pneg %p59
      %p224 = pneg %p56
      %p225 = pneg %p80
      %p226 = pneg %p77
      %p227 = pneg %p101
      %p228 = pneg %p98
      %p229 = pneg %p122
      %p230 = pneg %p119
      %p231 = pneg %p143
      %p232 = pneg %p140
      %p233 = pneg %p169
      %p234 = pneg %p166
      %p235 = scmp.lt.s32.totalorder %s17, 1
      %s236 = scalar_select %p235, %s17, 1
      %s237 = smul.addr %s236, 4
      %s238 = smul.addr %s237, 8
      %s239 = scalar_lea.vmem %s6, %s238
      %p240 = scmp.lt.s32.totalorder %s17, 1
      %s241 = scalar_select %p240, %s17, 1
      %s242 = smul.addr %s241, 8
      %s243 = scalar_lea.vmem %s0, %s242
      %p244 = scmp.lt.s32.totalorder %s17, 1
      %s245 = scalar_select %p244, %s17, 1
      %s246 = smul.addr %s245, 4
      %s247 = smul.addr %s246, 8
      %s248 = scalar_lea.vmem %s6, %s247
      %v249 = vld [vmem:[%s1] sm:$0xff]
      %v250 = vld [vmem:[%s1 + $0x8] sm:$0xff]
      %v251 = vld [vmem:[%s1 + $0x10] sm:$0xff]
      %v252 = vld [vmem:[%s1 + $0x18] sm:$0xff]
      %v253 = vld [vmem:[%s243] sm:$0xff]
      %v254 = vld [vmem:[%s2] sm:$0xff]
      %v255 = vld [vmem:[%s2 + $0x8] sm:$0xff]
      %v256 = vld [vmem:[%s2 + $0x10] sm:$0xff]
      %v257 = vld [vmem:[%s2 + $0x18] sm:$0xff]
      %259 = vset.pattern.permute.xlu0 0
      %260 = vperm.xlu0 %259, %v254
      %v261 = vpop.permute.xlu0 %260
      %264 = vset.pattern.permute.xlu0 0
      %265 = vperm.xlu0 %264, %v255
      %v266 = vpop.permute.xlu0 %265
      %269 = vset.pattern.permute.xlu0 0
      %270 = vperm.xlu0 %269, %v256
      %v271 = vpop.permute.xlu0 %270
      %274 = vset.pattern.permute.xlu0 0
      %275 = vperm.xlu0 %274, %v257
      %v276 = vpop.permute.xlu0 %275
      %vm278 = vcmask 64512
      %v280 = vsel %vm278, %v249, 0
      %v283 = vsel %vm278, %v250, 0
      %v286 = vsel %vm278, %v251, 0
      %v289 = vsel %vm278, %v252, 0
      %291 = vmatprep.subr.mxu0 0.0
      %292 = vmatpush1.msra.mxu0 %v253
      %293 = vmatprep.subr.mxu0 0.0
      %294 = vmatpush1.msra.mxu0 0.0
      %295 = vmatprep.subr.mxu0 0.0
      %296 = vmatpush1.msra.mxu0 0.0
      %297 = vmatprep.subr.mxu0 0.0
      %298 = vmatpush1.msra.mxu0 0.0
      %299 = vmatprep.subr.mxu0 0.0
      %300 = vmatpush1.msra.mxu0 0.0
      %301 = vmatprep.subr.mxu0 0.0
      %302 = vmatpush1.msra.mxu0 0.0
      %303 = vmatprep.subr.mxu0 0.0
      %304 = vmatpush1.msra.mxu0 0.0
      %305 = vmatprep.subr.mxu0 0.0
      %306 = vmatpush1.msra.mxu0 0.0
      %307 = vmatprep.subr.mxu0 0.0
      %308 = vmatpush1.msra.mxu0 0.0
      %309 = vmatprep.subr.mxu0 0.0
      %310 = vmatpush1.msra.mxu0 0.0
      %311 = vmatprep.subr.mxu0 0.0
      %312 = vmatpush1.msra.mxu0 0.0
      %313 = vmatprep.subr.mxu0 0.0
      %314 = vmatpush1.msra.mxu0 0.0
      %315 = vmatprep.subr.mxu0 0.0
      %316 = vmatpush1.msra.mxu0 0.0
      %317 = vmatprep.subr.mxu0 0.0
      %318 = vmatpush1.msra.mxu0 0.0
      %319 = vmatprep.subr.mxu0 0.0
      %320 = vmatpush1.msra.mxu0 0.0
      %321 = vmatprep.subr.mxu0 0.0
      %322 = vmatpush1.msra.mxu0 0.0
      %323 = vmatprep.subr.mxu0 0.0
      %324 = vmatpush1.msra.mxu0 0.0
      %325 = vmatprep.subr.mxu0 0.0
      %326 = vmatpush1.msra.mxu0 0.0
      %327 = vmatprep.subr.mxu0 0.0
      %328 = vmatpush1.msra.mxu0 0.0
      %329 = vmatprep.subr.mxu0 0.0
      %330 = vmatpush1.msra.mxu0 0.0
      %331 = vmatprep.subr.mxu0 0.0
      %332 = vmatpush1.msra.mxu0 0.0
      %333 = vmatprep.subr.mxu0 0.0
      %334 = vmatpush1.msra.mxu0 0.0
      %335 = vmatprep.subr.mxu0 0.0
      %336 = vmatpush1.msra.mxu0 0.0
      %337 = vmatprep.subr.mxu0 0.0
      %338 = vmatpush1.msra.mxu0 0.0
      %339 = vmatprep.subr.mxu0 0.0
      %340 = vmatpush1.msra.mxu0 0.0
      %341 = vmatprep.subr.mxu0 0.0
      %342 = vmatpush1.msra.mxu0 0.0
      %343 = vmatprep.subr.mxu0 0.0
      %344 = vmatpush1.msra.mxu0 0.0
      %345 = vmatprep.subr.mxu0 0.0
      %346 = vmatpush1.msra.mxu0 0.0
      %347 = vmatprep.subr.mxu0 0.0
      %348 = vmatpush1.msra.mxu0 0.0
      %349 = vmatprep.subr.mxu0 0.0
      %350 = vmatpush1.msra.mxu0 0.0
      %351 = vmatprep.subr.mxu0 0.0
      %352 = vmatpush1.msra.mxu0 0.0
      %353 = vmatprep.subr.mxu0 0.0
      %354 = vmatpush1.msra.mxu0 0.0
      %355 = vmatprep.mubr.f32.mxu0 0.0
      %356 = vmatmul.mubr.f32.gmra.mrb[0].mxu0 %v280
      %v357 = vpop.f32.mrb[0].mxu0
      %v358 = vadd.f32 %v261, %v357
      %v359 = vpop.f32.mrb[0].mxu0
      %360 = vmatprep.mubr.f32.mxu0 0.0
      %361 = vmatmul.mubr.f32.gmra.mrb[0].mxu0 %v283
      %v362 = vpop.f32.mrb[0].mxu0
      %v363 = vadd.f32 %v266, %v362
      %v364 = vpop.f32.mrb[0].mxu0
      %365 = vmatprep.mubr.f32.mxu0 0.0
      %366 = vmatmul.mubr.f32.gmra.mrb[0].mxu0 %v286
      %v367 = vpop.f32.mrb[0].mxu0
      %v368 = vadd.f32 %v271, %v367
      %v369 = vpop.f32.mrb[0].mxu0
      %370 = vmatprep.mubr.f32.mxu0 0.0
      %371 = vmatmul.mubr.f32.gmra.mrb[0].mxu0 %v289
      %v372 = vpop.f32.mrb[0].mxu0
      %v373 = vadd.f32 %v276, %v372
      %v374 = vpop.f32.mrb[0].mxu0
      %375 = vdwg.mxu0
      %376 = vadd.xlane.f32.xlu0 %v358
      %v377 = vpop.xlane.xlu0 %376
      %378 = vadd.xlane.f32.xlu0 %v363
      %v379 = vpop.xlane.xlu0 %378
      %380 = vadd.xlane.f32.xlu0 %v368
      %v381 = vpop.xlane.xlu0 %380
      %382 = vadd.xlane.f32.xlu0 %v373
      %v383 = vpop.xlane.xlu0 %382
      %v384 = vmul.f32 %v358, %v358
      %v385 = vmul.f32 %v363, %v363
      %v386 = vmul.f32 %v368, %v368
      %v387 = vmul.f32 %v373, %v373
      %388 = vadd.xlane.f32.xlu0 %v384
      %v389 = vpop.xlane.xlu0 %388
      %390 = vadd.xlane.f32.xlu0 %v385
      %v391 = vpop.xlane.xlu0 %390
      %392 = vadd.xlane.f32.xlu0 %v386
      %v393 = vpop.xlane.xlu0 %392
      %394 = vadd.xlane.f32.xlu0 %v387
      %v395 = vpop.xlane.xlu0 %394
      %v396 = vld [vmem:[%s5] sm:$0xf]
      %v397 = vld [vmem:[%s5 + $0x4] sm:$0xf]
      %v398 = vld [vmem:[%s5 + $0x8] sm:$0xf]
      %v399 = vld [vmem:[%s5 + $0xc] sm:$0xf]
      %v400 = vunpack.c.l.bf16 %v396
      %v401 = vunpack.c.l.bf16 %v397
      %v402 = vunpack.c.l.bf16 %v398
      %v403 = vunpack.c.l.bf16 %v399
      %vm404 = vcmask 261120
      %v406 = vsel %vm404, %v400, 0
      %v409 = vsel %vm404, %v401, 0
      %v412 = vsel %vm404, %v402, 0
      %v415 = vsel %vm404, %v403, 0
      %417 = vmatprep.subr.mxu0 0.0
      %418 = vmatpush1.msra.mxu0 %v377
      %419 = vmatprep.subr.mxu0 0.0
      %420 = vmatpush1.msra.mxu0 %v379
      %421 = vmatprep.subr.mxu0 0.0
      %422 = vmatpush1.msra.mxu0 %v381
      %423 = vmatprep.subr.mxu0 0.0
      %424 = vmatpush1.msra.mxu0 %v383
      %425 = vmatprep.subr.mxu0 0.0
      %426 = vmatpush1.msra.mxu0 0.0
      %427 = vmatprep.subr.mxu0 0.0
      %428 = vmatpush1.msra.mxu0 0.0
      %429 = vmatprep.subr.mxu0 0.0
      %430 = vmatpush1.msra.mxu0 0.0
      %431 = vmatprep.subr.mxu0 0.0
      %432 = vmatpush1.msra.mxu0 0.0
      %433 = vmatprep.subr.mxu0 0.0
      %434 = vmatpush1.msra.mxu0 0.0
      %435 = vmatprep.subr.mxu0 0.0
      %436 = vmatpush1.msra.mxu0 0.0
      %437 = vmatprep.subr.mxu0 0.0
      %438 = vmatpush1.msra.mxu0 0.0
      %439 = vmatprep.subr.mxu0 0.0
      %440 = vmatpush1.msra.mxu0 0.0
      %441 = vmatprep.subr.mxu0 0.0
      %442 = vmatpush1.msra.mxu0 0.0
      %443 = vmatprep.subr.mxu0 0.0
      %444 = vmatpush1.msra.mxu0 0.0
      %445 = vmatprep.subr.mxu0 0.0
      %446 = vmatpush1.msra.mxu0 0.0
      %447 = vmatprep.subr.mxu0 0.0
      %448 = vmatpush1.msra.mxu0 0.0
      %449 = vmatprep.subr.mxu0 0.0
      %450 = vmatpush1.msra.mxu0 0.0
      %451 = vmatprep.subr.mxu0 0.0
      %452 = vmatpush1.msra.mxu0 0.0
      %453 = vmatprep.subr.mxu0 0.0
      %454 = vmatpush1.msra.mxu0 0.0
      %455 = vmatprep.subr.mxu0 0.0
      %456 = vmatpush1.msra.mxu0 0.0
      %457 = vmatprep.subr.mxu0 0.0
      %458 = vmatpush1.msra.mxu0 0.0
      %459 = vmatprep.subr.mxu0 0.0
      %460 = vmatpush1.msra.mxu0 0.0
      %461 = vmatprep.subr.mxu0 0.0
      %462 = vmatpush1.msra.mxu0 0.0
      %463 = vmatprep.subr.mxu0 0.0
      %464 = vmatpush1.msra.mxu0 0.0
      %465 = vmatprep.subr.mxu0 0.0
      %466 = vmatpush1.msra.mxu0 0.0
      %467 = vmatprep.subr.mxu0 0.0
      %468 = vmatpush1.msra.mxu0 0.0
      %469 = vmatprep.subr.mxu0 0.0
      %470 = vmatpush1.msra.mxu0 0.0
      %471 = vmatprep.subr.mxu0 0.0
      %472 = vmatpush1.msra.mxu0 0.0
      %473 = vmatprep.subr.mxu0 0.0
      %474 = vmatpush1.msra.mxu0 0.0
      %475 = vmatprep.subr.mxu0 0.0
      %476 = vmatpush1.msra.mxu0 0.0
      %477 = vmatprep.subr.mxu0 0.0
      %478 = vmatpush1.msra.mxu0 0.0
      %479 = vmatprep.subr.mxu0 0.0
      %480 = vmatpush1.msra.mxu0 0.0
      %481 = vmatprep.mubr.f32.mxu0 0.0
      %482 = vmatmul.mubr.f32.gmra.mrb[0].mxu0 %v406
      %v483 = vpop.f32.mrb[0].mxu0
      %v484 = vadd.f32 0.0, %v483
      %v485 = vpop.f32.mrb[0].mxu0
      %486 = vmatprep.mubr.f32.mxu0 0.0
      %487 = vmatmul.mubr.f32.gmra.mrb[0].mxu0 %v409
      %v488 = vpop.f32.mrb[0].mxu0
      %v489 = vadd.f32 0.0, %v488
      %v490 = vpop.f32.mrb[0].mxu0
      %491 = vmatprep.mubr.f32.mxu0 0.0
      %492 = vmatmul.mubr.f32.gmra.mrb[0].mxu0 %v412
      %v493 = vpop.f32.mrb[0].mxu0
      %v494 = vadd.f32 0.0, %v493
      %v495 = vpop.f32.mrb[0].mxu0
      %496 = vmatprep.mubr.f32.mxu0 0.0
      %497 = vmatmul.mubr.f32.gmra.mrb[0].mxu0 %v415
      %v498 = vpop.f32.mrb[0].mxu0
      %v499 = vadd.f32 0.0, %v498
      %v500 = vpop.f32.mrb[0].mxu0
      %501 = vdwg.mxu0
      %v502 = vmul.f32 %v484, 0.00390625
      %v503 = vmul.f32 %v489, 0.00390625
      %v504 = vmul.f32 %v494, 0.00390625
      %v505 = vmul.f32 %v499, 0.00390625
      %506 = vmatprep.subr.mxu0 0.0
      %507 = vmatpush1.msra.mxu0 %v389
      %508 = vmatprep.subr.mxu0 0.0
      %509 = vmatpush1.msra.mxu0 %v391
      %510 = vmatprep.subr.mxu0 0.0
      %511 = vmatpush1.msra.mxu0 %v393
      %512 = vmatprep.subr.mxu0 0.0
      %513 = vmatpush1.msra.mxu0 %v395
      %514 = vmatprep.subr.mxu0 0.0
      %515 = vmatpush1.msra.mxu0 0.0
      %516 = vmatprep.subr.mxu0 0.0
      %517 = vmatpush1.msra.mxu0 0.0
      %518 = vmatprep.subr.mxu0 0.0
      %519 = vmatpush1.msra.mxu0 0.0
      %520 = vmatprep.subr.mxu0 0.0
      %521 = vmatpush1.msra.mxu0 0.0
      %522 = vmatprep.subr.mxu0 0.0
      %523 = vmatpush1.msra.mxu0 0.0
      %524 = vmatprep.subr.mxu0 0.0
      %525 = vmatpush1.msra.mxu0 0.0
      %526 = vmatprep.subr.mxu0 0.0
      %527 = vmatpush1.msra.mxu0 0.0
      %528 = vmatprep.subr.mxu0 0.0
      %529 = vmatpush1.msra.mxu0 0.0
      %530 = vmatprep.subr.mxu0 0.0
      %531 = vmatpush1.msra.mxu0 0.0
      %532 = vmatprep.subr.mxu0 0.0
      %533 = vmatpush1.msra.mxu0 0.0
      %534 = vmatprep.subr.mxu0 0.0
      %535 = vmatpush1.msra.mxu0 0.0
      %536 = vmatprep.subr.mxu0 0.0
      %537 = vmatpush1.msra.mxu0 0.0
      %538 = vmatprep.subr.mxu0 0.0
      %539 = vmatpush1.msra.mxu0 0.0
      %540 = vmatprep.subr.mxu0 0.0
      %541 = vmatpush1.msra.mxu0 0.0
      %542 = vmatprep.subr.mxu0 0.0
      %543 = vmatpush1.msra.mxu0 0.0
      %544 = vmatprep.subr.mxu0 0.0
      %545 = vmatpush1.msra.mxu0 0.0
      %546 = vmatprep.subr.mxu0 0.0
      %547 = vmatpush1.msra.mxu0 0.0
      %548 = vmatprep.subr.mxu0 0.0
      %549 = vmatpush1.msra.mxu0 0.0
      %550 = vmatprep.subr.mxu0 0.0
      %551 = vmatpush1.msra.mxu0 0.0
      %552 = vmatprep.subr.mxu0 0.0
      %553 = vmatpush1.msra.mxu0 0.0
      %554 = vmatprep.subr.mxu0 0.0
      %555 = vmatpush1.msra.mxu0 0.0
      %556 = vmatprep.subr.mxu0 0.0
      %557 = vmatpush1.msra.mxu0 0.0
      %558 = vmatprep.subr.mxu0 0.0
      %559 = vmatpush1.msra.mxu0 0.0
      %560 = vmatprep.subr.mxu0 0.0
      %561 = vmatpush1.msra.mxu0 0.0
      %562 = vmatprep.subr.mxu0 0.0
      %563 = vmatpush1.msra.mxu0 0.0
      %564 = vmatprep.subr.mxu0 0.0
      %565 = vmatpush1.msra.mxu0 0.0
      %566 = vmatprep.subr.mxu0 0.0
      %567 = vmatpush1.msra.mxu0 0.0
      %568 = vmatprep.subr.mxu0 0.0
      %569 = vmatpush1.msra.mxu0 0.0
      %570 = vmatprep.mubr.f32.mxu0 0.0
      %571 = vmatmul.mubr.f32.gmra.mrb[0].mxu0 %v406
      %v572 = vpop.f32.mrb[0].mxu0
      %v573 = vadd.f32 0.0, %v572
      %v574 = vpop.f32.mrb[0].mxu0
      %575 = vmatprep.mubr.f32.mxu0 0.0
      %576 = vmatmul.mubr.f32.gmra.mrb[0].mxu0 %v409
      %v577 = vpop.f32.mrb[0].mxu0
      %v578 = vadd.f32 0.0, %v577
      %v579 = vpop.f32.mrb[0].mxu0
      %580 = vmatprep.mubr.f32.mxu0 0.0
      %581 = vmatmul.mubr.f32.gmra.mrb[0].mxu0 %v412
      %v582 = vpop.f32.mrb[0].mxu0
      %v583 = vadd.f32 0.0, %v582
      %v584 = vpop.f32.mrb[0].mxu0
      %585 = vmatprep.mubr.f32.mxu0 0.0
      %586 = vmatmul.mubr.f32.gmra.mrb[0].mxu0 %v415
      %v587 = vpop.f32.mrb[0].mxu0
      %v588 = vadd.f32 0.0, %v587
      %v589 = vpop.f32.mrb[0].mxu0
      %590 = vdwg.mxu0
      %v591 = vmul.f32 %v573, 0.00390625
      %v592 = vmul.f32 %v578, 0.00390625
      %v593 = vmul.f32 %v583, 0.00390625
      %v594 = vmul.f32 %v588, 0.00390625
      %v595 = vmul.f32 %v502, %v502
      %v596 = vmul.f32 %v503, %v503
      %v597 = vmul.f32 %v504, %v504
      %v598 = vmul.f32 %v505, %v505
      %v599 = vsub.f32 %v591, %v595
      %v600 = vsub.f32 %v592, %v596
      %v601 = vsub.f32 %v593, %v597
      %v602 = vsub.f32 %v594, %v598
      %v603 = vmax.f32 %v599, 0.0
      %v604 = vmax.f32 %v600, 0.0
      %v605 = vmax.f32 %v601, 0.0
      %v606 = vmax.f32 %v602, 0.0
      %v607 = vadd.f32 %v603, 1e-06
      %v608 = vadd.f32 %v604, 1e-06
      %v609 = vadd.f32 %v605, 1e-06
      %v610 = vadd.f32 %v606, 1e-06
      %v611 = vrsqrt.pop %v607
      %v612 = vrsqrt.pop %v608
      %v613 = vrsqrt.pop %v609
      %v614 = vrsqrt.pop %v610
      %v615 = vld [vmem:[%s3] sm:$0xff]
      %v616 = vld [vmem:[%s3 + $0x8] sm:$0xff]
      %v617 = vld [vmem:[%s3 + $0x10] sm:$0xff]
      %v618 = vld [vmem:[%s3 + $0x18] sm:$0xff]
      %v619 = vmul.f32 %v611, %v615
      %v620 = vmul.f32 %v612, %v616
      %v621 = vmul.f32 %v613, %v617
      %v622 = vmul.f32 %v614, %v618
      %v623 = vld [vmem:[%s4] sm:$0xff]
      %v624 = vld [vmem:[%s4 + $0x8] sm:$0xff]
      %v625 = vld [vmem:[%s4 + $0x10] sm:$0xff]
      %v626 = vld [vmem:[%s4 + $0x18] sm:$0xff]
      %v627 = vmul.f32 %v502, %v619
      %v628 = vmul.f32 %v503, %v620
      %v629 = vmul.f32 %v504, %v621
      %v630 = vmul.f32 %v505, %v622
      %v631 = vsub.f32 %v623, %v627
      %v632 = vsub.f32 %v624, %v628
      %v633 = vsub.f32 %v625, %v629
      %v634 = vsub.f32 %v626, %v630
      %636 = vset.pattern.permute.xlu0 0
      %637 = vperm.xlu0 %636, %v619
      %v638 = vpop.permute.xlu0 %637
      %641 = vset.pattern.permute.xlu0 0
      %642 = vperm.xlu0 %641, %v620
      %v643 = vpop.permute.xlu0 %642
      %646 = vset.pattern.permute.xlu0 0
      %647 = vperm.xlu0 %646, %v621
      %v648 = vpop.permute.xlu0 %647
      %651 = vset.pattern.permute.xlu0 0
      %652 = vperm.xlu0 %651, %v622
      %v653 = vpop.permute.xlu0 %652
      %v655 = vmul.f32 %v358, %v638
      %v656 = vmul.f32 %v363, %v643
      %v657 = vmul.f32 %v368, %v648
      %v658 = vmul.f32 %v373, %v653
      %660 = vset.pattern.permute.xlu0 0
      %661 = vperm.xlu0 %660, %v631
      %v662 = vpop.permute.xlu0 %661
      %665 = vset.pattern.permute.xlu0 0
      %666 = vperm.xlu0 %665, %v632
      %v667 = vpop.permute.xlu0 %666
      %670 = vset.pattern.permute.xlu0 0
      %671 = vperm.xlu0 %670, %v633
      %v672 = vpop.permute.xlu0 %671
      %675 = vset.pattern.permute.xlu0 0
      %676 = vperm.xlu0 %675, %v634
      %v677 = vpop.permute.xlu0 %676
      %v679 = vadd.f32 %v655, %v662
      %v680 = vadd.f32 %v656, %v667
      %v681 = vadd.f32 %v657, %v672
      %v682 = vadd.f32 %v658, %v677
      %vm683 = vcmp.gt.f32.partialorder %v679, 0.0
      %vm684 = vcmp.gt.f32.partialorder %v680, 0.0
      %vm685 = vcmp.gt.f32.partialorder %v681, 0.0
      %vm686 = vcmp.gt.f32.partialorder %v682, 0.0
      %v687 = vmul.f32 %v679, 0.2
      %v688 = vmul.f32 %v680, 0.2
      %v689 = vmul.f32 %v681, 0.2
      %v690 = vmul.f32 %v682, 0.2
      %v691 = vsel %vm683, %v679, %v687
      %v692 = vsel %vm684, %v680, %v688
      %v693 = vsel %vm685, %v681, %v689
      %v694 = vsel %vm686, %v682, %v690
      %695 = vst [vmem:[%s248] sm:$0xff] %v691
      %696 = vst [vmem:[%s248 + $0x8] sm:$0xff] %v692
      %697 = vst [vmem:[%s248 + $0x10] sm:$0xff] %v693
      %698 = vst [vmem:[%s248 + $0x18] sm:$0xff] %v694
      %p699 = scmp.lt.s32.totalorder %s17, 1
      %s700 = scalar_select %p699, %s17, 1
      %s701 = smul.addr %s700, 4
      %s702 = smul.addr %s701, 8
      %s703 = scalar_lea.vmem %s6, %s702
      // Predicated region
      $region45: #{shared_mlp_forward.1} parent=43 // pred_check
        %p704 = pneg %p166
      $region46: #{shared_mlp_forward.1} parent=43 // pred_check_branch
        %706 = sbr.rel (%p704) target = $region48
      $region47: #{shared_mlp_forward.1} parent=43 // pred_region
        _
      $region48: #{shared_mlp_forward.1} parent=43 // pred_fallthru
        _
    $region44: #{shared_mlp_forward.1} parent=5 // pred_fallthru
      _
    %p707 = scmp.le.s32.totalorder 2, %s12
    // Predicated region
    $region49: #{shared_mlp_forward.1} parent=5 // pred_check
      %p708 = pneg %p707
    $region50: #{shared_mlp_forward.1} parent=5 // pred_check_branch
      %710 = sbr.rel (%p708) target = $region52
    $region51: #{shared_mlp_forward.1} parent=5 // pred_region
      %s711 = ssub.s32 %s12, 2
      // Predicated region
      $region53: #{shared_mlp_forward.1} parent=51 // pred_check
        %p712 = pneg %p172
      $region54: #{shared_mlp_forward.1} parent=51 // pred_check_branch
        %714 = sbr.rel (%p712) target = $region56
      $region55: #{shared_mlp_forward.1} parent=51 // pred_region
        %p715 = scmp.lt.s32.totalorder %s18, 1
        %s716 = scalar_select %p715, %s18, 1
        %s717 = smul.addr %s716, 4
        %s718 = smul.addr %s717, 8
        %s719 = scalar_lea.vmem %s6, %s718
      $region56: #{shared_mlp_forward.1} parent=51 // pred_fallthru
        _
    $region52: #{shared_mlp_forward.1} parent=5 // pred_fallthru
      _
  $region6: #{shared_mlp_forward.1} parent=0 // loop_footer
    %s16 = sadd.s32 1, %s12
  $region7: #{shared_mlp_forward.1} parent=0 // loop_footer_branch
    %11 = sbr.rel target = $region3
  $region8: #{shared_mlp_forward.1} parent=0 // loop_exit
    _

</llo_original>
